<compile_context>
chip_gen: v5e
topology: v5e:2x2
jax: 0.10.0
libtpu: 0.0.40
codegen_flags: <defaults>
</compile_context>

<pallas_src>
import functools

import jax
import jax.numpy as jnp
from jax import lax
from jax.experimental import pallas as pl
from jax.experimental.pallas import tpu as pltpu

hidden_size = 18


def _mlp_kernel(x_ref, w1_ref, b1_ref, w3_ref, b3_ref, o_ref):
    """Shapes seen by the kernel:
      x_ref  : [TILE_B, D_in]  batch tile
      w1_ref : [H, D_in]       resident weights
      b1_ref : [H, 1]          fc1 bias (column)
      w3_ref : [H, 1]          fc3 weight (column)
      b3_ref : [1]             fc3 bias, scalar in SMEM
      o_ref  : [1, TILE_B]     lane-dense output slab
    """
    # fc1 on the MXU's native trans-B path: contract the shared D_in axis of
    # w1 [H, D_in] and x [TILE_B, D_in] -> h [H, TILE_B], f32 accumulation.
    h = lax.dot_general(
        w1_ref[...],
        x_ref[...],
        dimension_numbers=(((1,), (1,)), ((), ())),
        preferred_element_type=jnp.float32,
    )
    h = jnp.maximum(h + b1_ref[...], 0.0)  # bias + ReLU on the VPU

    # fc3 (H -> 1): broadcast-mul by w3 column + reduce over H (sublanes),
    # avoiding a second MXU matmul with a single result column.
    out = jnp.sum(h * w3_ref[...], axis=0, keepdims=True) + b3_ref[0]  # [1, TILE_B]
    o_ref[...] = out


@functools.partial(jax.jit, static_argnames=("tile_b",))
def net_forward(x, w1, b1, w3, b3, *, tile_b=512):
    B, D_in = x.shape
    H = w1.shape[0]

    # Mirrors `x.float()` from the torch module; no-op (trace-time) for f32.
    if x.dtype != jnp.float32:
        x = x.astype(jnp.float32)

    # Batch tiling: one grid step per TILE_B rows. TILE_B=512 keeps the
    # double-buffered x tile tiny (<< scoped VMEM on v5e/v6e/v7x) while
    # amortizing per-step pipeline overhead; the batch axis is "parallel" so
    # it shards across TensorCores on v7x megacore.
    tb = min(tile_b, B)
    n_tiles = pl.cdiv(B, tb)
    b_padded = n_tiles * tb
    if b_padded != B:
        x = jnp.pad(x, ((0, b_padded - B), (0, 0)))

    out = pl.pallas_call(
        _mlp_kernel,
        out_shape=jax.ShapeDtypeStruct((1, b_padded), jnp.float32),
        grid=(n_tiles,),
        in_specs=[
            pl.BlockSpec((tb, D_in), lambda i: (i, 0)),          # x batch tile
            pl.BlockSpec((H, D_in), lambda i: (0, 0)),           # w1 (resident)
            pl.BlockSpec((H, 1), lambda i: (0, 0)),              # b1 column
            pl.BlockSpec((H, 1), lambda i: (0, 0)),              # w3 column
            pl.BlockSpec(memory_space=pltpu.MemorySpace.SMEM),   # b3 scalar
        ],
        out_specs=pl.BlockSpec((1, tb), lambda i: (0, i)),       # lane-dense rows
        compiler_params=pltpu.CompilerParams(
            dimension_semantics=("parallel",)),
    )(x, w1, b1.reshape(H, 1), w3.reshape(H, 1), b3.reshape(1))

    return out.reshape(b_padded, 1)[:B]


def init_params(key, input_size, hidden):
    # PyTorch nn.Linear default init: U(-1/sqrt(fan_in), 1/sqrt(fan_in))
    k1, k2, k3, k4 = jax.random.split(key, 4)
    bound1 = 1.0 / jnp.sqrt(jnp.float32(input_size))
    bound3 = 1.0 / jnp.sqrt(jnp.float32(hidden))
    w1 = jax.random.uniform(k1, (hidden, input_size), jnp.float32, -bound1, bound1)
    b1 = jax.random.uniform(k2, (hidden,), jnp.float32, -bound1, bound1)
    w3 = jax.random.uniform(k3, (1, hidden), jnp.float32, -bound3, bound3)
    b3 = jax.random.uniform(k4, (1,), jnp.float32, -bound3, bound3)
    return w1, b1, w3, b3


if __name__ == "__main__":
    key = jax.random.PRNGKey(0)
    kx, kp = jax.random.split(key)

    batch, input_size = 8, 32
    x = jax.random.normal(kx, (batch, input_size), dtype=jnp.float32)
    w1, b1, w3, b3 = init_params(kp, input_size, hidden_size)

    out = jax.block_until_ready(net_forward(x, w1, b1, w3, b3))

    # Reference check in plain JAX (matches torch: relu(fc1(x)) -> fc3)
    ref = jnp.maximum(x @ w1.T + b1, 0.0) @ w3.T + b3
    assert out.shape == (batch, 1)
    assert jnp.allclose(out, ref, atol=1e-5, rtol=1e-5)

    # Exercise the batch-tiled + padded multi-grid-step path once.
    xb = jax.random.normal(kx, (1000, input_size), dtype=jnp.float32)
    outb = jax.block_until_ready(net_forward(xb, w1, b1, w3, b3, tile_b=512))
    refb = jnp.maximum(xb @ w1.T + b1, 0.0) @ w3.T + b3
    assert outb.shape == (1000, 1)
    assert jnp.allclose(outb, refb, atol=1e-4, rtol=1e-4)

    print("KERNEL_OK")
</pallas_src>

<mosaic_0001>
module attributes {stable_mosaic.version = 11 : i64} {
  func.func @_mlp_kernel(%arg0: i32, %arg1: memref<8x32xf32, #tpu.memory_space<vmem>>, %arg2: memref<18x32xf32, #tpu.memory_space<vmem>>, %arg3: memref<18x1xf32, #tpu.memory_space<vmem>>, %arg4: memref<18x1xf32, #tpu.memory_space<vmem>>, %arg5: memref<1xf32, #tpu.memory_space<smem>>, %arg6: memref<1x8xf32, #tpu.memory_space<vmem>>) attributes {dimension_semantics = [#tpu.dimension_semantics<parallel>], iteration_bounds = array<i64: 1>, scalar_prefetch = 0 : i64, scratch_operands = 0 : i64, tpu.core_type = #tpu.core_type<tc>, window_params = [{transform_indices = @transform_0, window_bounds = array<i64: 8, 32>}, {pipeline_mode = #tpu.pipeline_mode<synchronous>, transform_indices = @transform_1, window_bounds = array<i64: 18, 32>}, {pipeline_mode = #tpu.pipeline_mode<synchronous>, transform_indices = @transform_2, window_bounds = array<i64: 18, 1>}, {pipeline_mode = #tpu.pipeline_mode<synchronous>, transform_indices = @transform_3, window_bounds = array<i64: 18, 1>}, {transform_indices = @transform_4, window_bounds = array<i64: 1>}, {transform_indices = @transform_5, window_bounds = array<i64: 1, 8>}]} {
    %c0 = arith.constant 0 : index
    %c0_0 = arith.constant 0 : index
    %0 = vector.load %arg2[%c0, %c0_0] : memref<18x32xf32, #tpu.memory_space<vmem>>, vector<18x32xf32>
    %c0_1 = arith.constant 0 : index
    %c0_2 = arith.constant 0 : index
    %1 = vector.load %arg1[%c0_1, %c0_2] : memref<8x32xf32, #tpu.memory_space<vmem>>, vector<8x32xf32>
    %cst = arith.constant dense<0.000000e+00> : vector<18x8xf32>
    %2 = tpu.matmul %0, %1, %cst {dimension_numbers = #tpu.dot_dimension_numbers<[1], [1], [0], [0], [0, 0, 1, 0], [], []>} : vector<18x32xf32>, vector<8x32xf32>, vector<18x8xf32> -> vector<18x8xf32>
    %c0_3 = arith.constant 0 : index
    %c0_4 = arith.constant 0 : index
    %3 = vector.load %arg3[%c0_3, %c0_4] : memref<18x1xf32, #tpu.memory_space<vmem>>, vector<18x1xf32>
    %4 = vector.broadcast %3 : vector<18x1xf32> to vector<18x8xf32>
    %5 = arith.addf %2, %4 : vector<18x8xf32>
    %cst_5 = arith.constant 0.000000e+00 : f32
    %6 = vector.broadcast %cst_5 : f32 to vector<18x8xf32>
    %7 = arith.maximumf %5, %6 : vector<18x8xf32>
    %c0_6 = arith.constant 0 : index
    %c0_7 = arith.constant 0 : index
    %8 = vector.load %arg4[%c0_6, %c0_7] : memref<18x1xf32, #tpu.memory_space<vmem>>, vector<18x1xf32>
    %9 = vector.broadcast %8 : vector<18x1xf32> to vector<18x8xf32>
    %10 = arith.mulf %7, %9 : vector<18x8xf32>
    %cst_8 = arith.constant dense<0.000000e+00> : vector<8xf32>
    %11 = vector.multi_reduction <add>, %10, %cst_8 [0] : vector<18x8xf32> to vector<8xf32>
    %12 = vector.shape_cast %11 : vector<8xf32> to vector<1x8xf32>
    %c0_9 = arith.constant 0 : index
    %13 = memref.load %arg5[%c0_9] : memref<1xf32, #tpu.memory_space<smem>>
    %14 = vector.broadcast %13 : f32 to vector<1x8xf32>
    %15 = arith.addf %12, %14 : vector<1x8xf32>
    %c0_10 = arith.constant 0 : index
    %c0_11 = arith.constant 0 : index
    %16 = vector.load %arg6[%c0_10, %c0_11] : memref<1x8xf32, #tpu.memory_space<vmem>>, vector<1x8xf32>
    tpu.vector_store %arg6[%c0_10, %c0_11], %15 {strides = array<i32>} : memref<1x8xf32, #tpu.memory_space<vmem>>, vector<1x8xf32>,
    return
  }
  func.func @transform_0(%arg0: i32) -> (i32, i32) {
    %c0_i32 = arith.constant 0 : i32
    %c0_i32_0 = arith.constant 0 : i32
    return %arg0, %c0_i32 : i32, i32
  }
  func.func @transform_1(%arg0: i32) -> (i32, i32) {
    %c0_i32 = arith.constant 0 : i32
    %c0_i32_0 = arith.constant 0 : i32
    %c0_i32_1 = arith.constant 0 : i32
    return %c0_i32, %c0_i32_0 : i32, i32
  }
  func.func @transform_2(%arg0: i32) -> (i32, i32) {
    %c0_i32 = arith.constant 0 : i32
    %c0_i32_0 = arith.constant 0 : i32
    %c0_i32_1 = arith.constant 0 : i32
    return %c0_i32, %c0_i32_0 : i32, i32
  }
  func.func @transform_3(%arg0: i32) -> (i32, i32) {
    %c0_i32 = arith.constant 0 : i32
    %c0_i32_0 = arith.constant 0 : i32
    %c0_i32_1 = arith.constant 0 : i32
    return %c0_i32, %c0_i32_0 : i32, i32
  }
  func.func @transform_4(%arg0: i32) -> i32 {
    %c0_i32 = arith.constant 0 : i32
    %c0_i32_0 = arith.constant 0 : i32
    return %c0_i32 : i32
  }
  func.func @transform_5(%arg0: i32) -> (i32, i32) {
    %c0_i32 = arith.constant 0 : i32
    %c0_i32_0 = arith.constant 0 : i32
    return %c0_i32, %arg0 : i32, i32
  }
}

</mosaic_0001>

<llo_original>
// kernel: net_forward.1
$region0: #{net_forward.1}
  #allocation0 [shape = 'u32[]', space=smem, size = 0x4, offset = 0x4, fixed_abs, tag = 'smem constant byte address 0x4 - core index']
  #allocation1 [shape = 'u32[72,128]{1,0:T(1,128)}', space=vmem, size = 0x9000, scoped, tag = 'internal scratch']
  #allocation2 [shape = 'f32[1]{0:T(128)S(6)}', space=smem, size = 0x200, scoped, tag = 'scoped memory for net_forward.1']
  %s0 = inlined_call_operand.vmem [shape: f32[8,32], index: 0, kind: input, shape index: {}]
  %s1 = inlined_call_operand.vmem [shape: f32[18,32], index: 1, kind: input, shape index: {}]
  %s2 = inlined_call_operand.vmem [shape: f32[18,1], index: 2, kind: input, shape index: {}]
  %s3 = inlined_call_operand.vmem [shape: f32[18,1], index: 3, kind: input, shape index: {}]
  %s4 = inlined_call_operand.<no memory space> [shape: f32[1], index: 4, kind: input, shape index: {}]
  %s5 = inlined_call_operand.hbm [shape: f32[1,8], index: 5, kind: output, shape index: {}]
  %s6 = sld [smem:[#allocation0]]
  $region30: #{net_forward.1} parent=0
    _
  %s8 = ssub.s32 1, %s6
  %s9 = scalar_select 0, %s8, %s6
  %10 = sst [smem:[#allocation2]] %s4
  $region1: #{net_forward.1} parent=0
    #allocation3 [shape = 'u8[512]{0}', space=vmem, size = 0x400, scoped, tag = 'output window, operand 0, single buffered']
    #allocation4 [shape = 's32[1]{0}', space=sflag, size = 0x4, scoped, tag = 'scoped memory for net_forward.1']
    %11 = vsyncpa [#allocation4], 0
    // Predicated region
    $region2: #{net_forward.1} parent=1 // pred_check
      _
    $region3: #{net_forward.1} parent=1 // pred_check_branch
      %13 = sbr.rel (0) target = $region5
    $region4: #{net_forward.1} parent=1 // pred_region
      _
    $region5: #{net_forward.1} parent=1 // pred_fallthru
      _
    // Predicated region
    $region6: #{net_forward.1} parent=1 // pred_check
      _
    $region7: #{net_forward.1} parent=1 // pred_check_branch
      %15 = sbr.rel (0) target = $region9
    $region8: #{net_forward.1} parent=1 // pred_region
      _
    $region9: #{net_forward.1} parent=1 // pred_fallthru
      _
    // Predicated region
    $region10: #{net_forward.1} parent=1 // pred_check
      _
    $region11: #{net_forward.1} parent=1 // pred_check_branch
      %17 = sbr.rel (0) target = $region13
    $region12: #{net_forward.1} parent=1 // pred_region
      _
    $region13: #{net_forward.1} parent=1 // pred_fallthru
      _
    // Predicated region
    $region14: #{net_forward.1} parent=1 // pred_check
      _
    $region15: #{net_forward.1} parent=1 // pred_check_branch
      %19 = sbr.rel (0) target = $region17
    $region16: #{net_forward.1} parent=1 // pred_region
      _
    $region17: #{net_forward.1} parent=1 // pred_fallthru
      _
    // Predicated region
    $region18: #{net_forward.1} parent=1 // pred_check
      _
    $region19: #{net_forward.1} parent=1 // pred_check_branch
      %21 = sbr.rel (0) target = $region21
    $region20: #{net_forward.1} parent=1 // pred_region
      _
    $region21: #{net_forward.1} parent=1 // pred_fallthru
      _
    %v22 = vld [vmem:[%s1] sm:$0xff]
    %v23 = vld [vmem:[%s1 + $0x8] sm:$0xff]
    %v24 = vld [vmem:[%s1 + $0x10] sm:$0x3]
    %v25 = vld [vmem:[%s0] sm:$0xff]
    %v26 = vld [vmem:[%s2] sm:$0xff]
    %v27 = vld [vmem:[%s2 + $0x8] sm:$0xff]
    %v28 = vld [vmem:[%s2 + $0x10] sm:$0x3]
    %30 = vset.pattern.permute.xlu0 0
    %31 = vperm.xlu0 %30, %v26
    %v32 = vpop.permute.xlu0 %31
    %35 = vset.pattern.permute.xlu0 0
    %36 = vperm.xlu0 %35, %v27
    %v37 = vpop.permute.xlu0 %36
    %40 = vset.pattern.permute.xlu0 0
    %41 = vperm.xlu0 %40, %v28
    %v42 = vpop.permute.xlu0 %41
    %vm44 = vcmask 261120
    %v46 = vsel %vm44, %v22, 0
    %v49 = vsel %vm44, %v23, 0
    %v52 = vsel %vm44, %v24, 0
    %v55 = vsel %vm44, %v25, 0
    %57 = vmatpush.xpose.msra.mxu0 0.0
    %58 = vmatpush.xpose.msra.mxu0 0.0
    %59 = vmatpush.xpose.msra.mxu0 0.0
    %60 = vmatpush.xpose.msra.mxu0 0.0
    %61 = vmatpush.xpose.msra.mxu0 0.0
    %62 = vmatpush.xpose.msra.mxu0 0.0
    %63 = vmatpush.xpose.msra.mxu0 0.0
    %64 = vmatpush.xpose.msra.mxu0 0.0
    %65 = vmatpush.xpose.msra.mxu0 0.0
    %66 = vmatpush.xpose.msra.mxu0 0.0
    %67 = vmatpush.xpose.msra.mxu0 0.0
    %68 = vmatpush.xpose.msra.mxu0 0.0
    %69 = vmatpush.xpose.msra.mxu0 0.0
    %70 = vmatpush.xpose.msra.mxu0 0.0
    %71 = vmatpush.xpose.msra.mxu0 0.0
    %72 = vmatpush.xpose.msra.mxu0 %v55
    %73 = vmatmul.f32.gmra.mxu0 %v46
    %v74 = vpop.f32.mrf.mxu0
    %v75 = vadd.f32 %v32, %v74
    %76 = vmatmul.f32.gmra.mxu0 %v49
    %v77 = vpop.f32.mrf.mxu0
    %v78 = vadd.f32 %v37, %v77
    %79 = vmatmul.f32.gmra.mxu0 %v52
    %v80 = vpop.f32.mrf.mxu0
    %v81 = vadd.f32 %v42, %v80
    %82 = vdwg.mxu0
    %v83 = vmax.f32 %v75, 0.0
    %v84 = vmax.f32 %v78, 0.0
    %v85 = vmax.f32 %v81, 0.0
    %v86 = vld [vmem:[%s3] sm:$0xff]
    %v87 = vld [vmem:[%s3 + $0x8] sm:$0xff]
    %v88 = vld [vmem:[%s3 + $0x10] sm:$0x3]
    %90 = vset.pattern.permute.xlu0 0
    %91 = vperm.xlu0 %90, %v86
    %v92 = vpop.permute.xlu0 %91
    %95 = vset.pattern.permute.xlu0 0
    %96 = vperm.xlu0 %95, %v87
    %v97 = vpop.permute.xlu0 %96
    %100 = vset.pattern.permute.xlu0 0
    %101 = vperm.xlu0 %100, %v88
    %v102 = vpop.permute.xlu0 %101
    %v104 = vmul.f32 %v83, %v92
    %v105 = vmul.f32 %v84, %v97
    %v106 = vmul.f32 %v85, %v102
    %vm107 = vcmask 64512
    %v108 = vsel %vm107, %v104, 0.0
    %v109 = vsel %vm107, %v105, 0.0
    %v110 = vadd.f32 %v108, %v109
    %vm111 = vcmask 58368
    %v112 = vsel %vm111, %v106, 0.0
    %v113 = vadd.f32 %v110, %v112
    %v114 = vrot.slane %v113, 4
    %v115 = vadd.f32 %v113, %v114
    %v116 = vrot.slane %v115, 2
    %v117 = vadd.f32 %v115, %v116
    %v118 = vrot.slane %v117, 1
    %v119 = vadd.f32 %v117, %v118
    %s120 = sld [smem:[#allocation2]]
    %v121 = vstv %s120
    %v122 = vadd.f32 %v119, %v121
    %vm123 = vcmask 57344
    %124 = vst.msk [vmem:[#allocation3] sm:$0x1] %vm123, %v122
    // Predicated region
    $region22: #{net_forward.1} parent=1 // pred_check
      _
    $region23: #{net_forward.1} parent=1 // pred_check_branch
      %126 = sbr.rel (0) target = $region25
    $region24: #{net_forward.1} parent=1 // pred_region
      %128 = vsyncadd [#allocation4], 0
      %s130 = sshll.u32 [#allocation3], 4
      %s131 = int_to_ptr.vmem [resolvable:$true] %s130
      %s132 = sshll.u32 %s5, 4
      %s133 = int_to_ptr.hbm [resolvable:$true] %s132
      %135 = dma.vmem_to_hbm [thread:$0]  %s131, 16, %s133, [#allocation4]
    $region25: #{net_forward.1} parent=1 // pred_fallthru
      _
    // Predicated region
    $region26: #{net_forward.1} parent=1 // pred_check
      _
    $region27: #{net_forward.1} parent=1 // pred_check_branch
      %137 = sbr.rel (0) target = $region29
    $region28: #{net_forward.1} parent=1 // pred_region
      %139 = dma.done [#allocation4], 16
    $region29: #{net_forward.1} parent=1 // pred_fallthru
      _
    %140 = vsyncpa [#allocation4], 1

</llo_original>
